<compile_context>
chip_gen: v7x
topology: tpu7x:2x2x1
jax: 0.10.0
libtpu: 0.0.40
codegen_flags: <defaults>
</compile_context>

<pallas_src>
import functools

import jax
import jax.numpy as jnp
from jax import lax
from jax.experimental import pallas as pl
from jax.experimental.pallas import tpu as pltpu


def _round_up(x: int, m: int) -> int:
    return ((x + m - 1) // m) * m


def _make_ce_kernel(c_true: int, tile_c: int):
    """Build the kernel, closing over static true-C and the C tile size."""
    need_col_mask = (c_true % tile_c) != 0  # only the remainder tile needs it

    def kernel(logits_ref, labels_ref, loss_ref, m_ref, l_ref, t_ref):
        j = pl.program_id(1)
        num_c_tiles = pl.num_programs(1)

        @pl.when(j == 0)
        def _init():
            m_ref[...] = jnp.full(m_ref.shape, -jnp.inf, jnp.float32)
            l_ref[...] = jnp.zeros_like(l_ref)
            t_ref[...] = jnp.zeros_like(t_ref)

        x = logits_ref[...].astype(jnp.float32)      # (TILE_N, TILE_C)
        labels = labels_ref[...]                     # (TILE_N, 1) int32
        tn, tc = x.shape

        # Global class index of every lane in this tile.
        col = j * tile_c + lax.broadcasted_iota(jnp.int32, (tn, tc), 1)

        # Mask padded class lanes so they do not affect max / sum(exp).
        if need_col_mask:
            x_m = jnp.where(col < c_true, x, -jnp.inf)
        else:
            x_m = x

        # Online (streaming) logsumexp update.
        m_prev = m_ref[...]
        m_new = jnp.maximum(m_prev, jnp.max(x_m, axis=1, keepdims=True))
        l_ref[...] = (l_ref[...] * jnp.exp(m_prev - m_new)
                      + jnp.sum(jnp.exp(x_m - m_new), axis=1, keepdims=True))
        m_ref[...] = m_new

        # Fused target-logit "gather" (labels never point at pad columns).
        t_ref[...] = t_ref[...] + jnp.sum(
            jnp.where(col == labels, x, 0.0), axis=1, keepdims=True)

        @pl.when(j == num_c_tiles - 1)
        def _finalize():
            loss_ref[...] = m_ref[...] + jnp.log(l_ref[...]) - t_ref[...]

    return kernel


@functools.partial(jax.jit, static_argnames=("tile_n", "tile_c"))
def cross_entropy_loss(logits, labels, *, tile_n: int = 256, tile_c: int = 2048):
    """logits: [N, C] float, labels: [N] int -> scalar float32 mean loss."""
    n, c = logits.shape

    # Lane-dense class tiles (multiple of 128), sublane-aligned batch tiles
    # (multiple of 8); clamp to the (rounded-up) problem size for tiny inputs.
    tile_n = min(tile_n, _round_up(n, 8))
    tile_c = min(tile_c, _round_up(c, 128))
    n_pad = _round_up(n, tile_n)
    c_pad = _round_up(c, tile_c)

    x = logits
    if (n_pad, c_pad) != (n, c):
        x = jnp.pad(logits, ((0, n_pad - n), (0, c_pad - c)))
    labels2d = labels.astype(jnp.int32).reshape(n, 1)
    if n_pad != n:
        labels2d = jnp.pad(labels2d, ((0, n_pad - n), (0, 0)))

    grid = (n_pad // tile_n, c_pad // tile_c)

    per_row_loss = pl.pallas_call(
        _make_ce_kernel(c, tile_c),
        out_shape=jax.ShapeDtypeStruct((n_pad, 1), jnp.float32),
        grid_spec=pltpu.PrefetchScalarGridSpec(
            num_scalar_prefetch=0,
            grid=grid,
            in_specs=[
                pl.BlockSpec((tile_n, tile_c), lambda i, j: (i, j)),
                pl.BlockSpec((tile_n, 1), lambda i, j: (i, 0)),
            ],
            out_specs=pl.BlockSpec((tile_n, 1), lambda i, j: (i, 0)),
            scratch_shapes=[
                pltpu.VMEM((tile_n, 1), jnp.float32),   # running max  m
                pltpu.VMEM((tile_n, 1), jnp.float32),   # running sum  l
                pltpu.VMEM((tile_n, 1), jnp.float32),   # target logit t
            ],
        ),
        compiler_params=pltpu.CompilerParams(
            dimension_semantics=("parallel", "arbitrary"),
            vmem_limit_bytes=48 * 1024 * 1024,
        ),
    )(x, labels2d)

    # Final reduction over a handful of rows in plain JAX, divided by the
    # *true* batch size (padded rows are sliced away).
    return jnp.sum(per_row_loss[:n, 0]) / jnp.float32(n)


def _reference(y_hat, y_truth):
    n = y_hat.shape[0]
    return jnp.mean(jax.nn.logsumexp(y_hat, axis=1)
                    - y_hat[jnp.arange(n), y_truth])


if __name__ == "__main__":
    key = jax.random.PRNGKey(0)

    # Case 1: small shapes consistent with the module (batch=8, classes=32).
    k1, k2, k3, k4 = jax.random.split(key, 4)
    N, C = 8, 32
    y_hat = jax.random.normal(k1, (N, C), dtype=jnp.float32)
    y_truth = jax.random.randint(k2, (N,), 0, C, dtype=jnp.int32)

    loss = jax.block_until_ready(cross_entropy_loss(y_hat, y_truth))
    ref = _reference(y_hat, y_truth)
    assert jnp.allclose(loss, ref, rtol=1e-5, atol=1e-5), (loss, ref)

    # Case 2: non-aligned shapes with small tiles to exercise the grid,
    # the online logsumexp across class tiles, and remainder-lane masking.
    N2, C2 = 20, 300
    y_hat2 = jax.random.normal(k3, (N2, C2), dtype=jnp.float32)
    y_truth2 = jax.random.randint(k4, (N2,), 0, C2, dtype=jnp.int32)

    loss2 = jax.block_until_ready(
        cross_entropy_loss(y_hat2, y_truth2, tile_n=8, tile_c=128))
    ref2 = _reference(y_hat2, y_truth2)
    assert jnp.allclose(loss2, ref2, rtol=1e-5, atol=1e-5), (loss2, ref2)

    print("KERNEL_OK")
</pallas_src>

<mosaic_0001>
module attributes {stable_mosaic.version = 11 : i64} {
  func.func @kernel(%arg0: i32, %arg1: i32, %arg2: memref<8x128xf32, #tpu.memory_space<vmem>>, %arg3: memref<8x1xi32, #tpu.memory_space<vmem>>, %arg4: memref<8x1xf32, #tpu.memory_space<vmem>>, %arg5: memref<8x1xf32, #tpu.memory_space<vmem>>, %arg6: memref<8x1xf32, #tpu.memory_space<vmem>>, %arg7: memref<8x1xf32, #tpu.memory_space<vmem>>) attributes {dimension_semantics = [#tpu.dimension_semantics<parallel>, #tpu.dimension_semantics<arbitrary>], iteration_bounds = array<i64: 1, 1>, scalar_prefetch = 0 : i64, scratch_operands = 3 : i64, tpu.core_type = #tpu.core_type<tc>, window_params = [{transform_indices = @transform_0, window_bounds = array<i64: 8, 128>}, {transform_indices = @transform_1, window_bounds = array<i64: 8, 1>}, {transform_indices = @transform_2, window_bounds = array<i64: 8, 1>}]} {
    %c0_i32 = arith.constant 0 : i32
    %0 = arith.cmpi eq, %arg1, %c0_i32 : i32
    %1 = arith.extui %0 : i1 to i32
    %c0_i32_0 = arith.constant 0 : i32
    %2 = arith.cmpi ne, %1, %c0_i32_0 : i32
    scf.if %2 {
      %cst_22 = arith.constant 0xFF800000 : f32
      %41 = vector.broadcast %cst_22 : f32 to vector<8x1xf32>
      %c0_23 = arith.constant 0 : index
      %c0_24 = arith.constant 0 : index
      %42 = vector.load %arg5[%c0_23, %c0_24] : memref<8x1xf32, #tpu.memory_space<vmem>>, vector<8x1xf32>
      tpu.vector_store %arg5[%c0_23, %c0_24], %41 {strides = array<i32>} : memref<8x1xf32, #tpu.memory_space<vmem>>, vector<8x1xf32>,
      %cst_25 = arith.constant 0.000000e+00 : f32
      %43 = vector.broadcast %cst_25 : f32 to vector<8x1xf32>
      %c0_26 = arith.constant 0 : index
      %c0_27 = arith.constant 0 : index
      %44 = vector.load %arg6[%c0_26, %c0_27] : memref<8x1xf32, #tpu.memory_space<vmem>>, vector<8x1xf32>
      tpu.vector_store %arg6[%c0_26, %c0_27], %43 {strides = array<i32>} : memref<8x1xf32, #tpu.memory_space<vmem>>, vector<8x1xf32>,
      %cst_28 = arith.constant 0.000000e+00 : f32
      %45 = vector.broadcast %cst_28 : f32 to vector<8x1xf32>
      %c0_29 = arith.constant 0 : index
      %c0_30 = arith.constant 0 : index
      %46 = vector.load %arg7[%c0_29, %c0_30] : memref<8x1xf32, #tpu.memory_space<vmem>>, vector<8x1xf32>
      tpu.vector_store %arg7[%c0_29, %c0_30], %45 {strides = array<i32>} : memref<8x1xf32, #tpu.memory_space<vmem>>, vector<8x1xf32>,
    } else {
    }
    %c0 = arith.constant 0 : index
    %c0_1 = arith.constant 0 : index
    %3 = vector.load %arg2[%c0, %c0_1] : memref<8x128xf32, #tpu.memory_space<vmem>>, vector<8x128xf32>
    %c0_2 = arith.constant 0 : index
    %c0_3 = arith.constant 0 : index
    %4 = vector.load %arg3[%c0_2, %c0_3] : memref<8x1xi32, #tpu.memory_space<vmem>>, vector<8x1xi32>
    %c128_i32 = arith.constant 128 : i32
    %5 = arith.muli %arg1, %c128_i32 : i32
    %6 = tpu.iota {dimensions = array<i32: 1>} : vector<8x128xi32>
    %7 = vector.broadcast %5 : i32 to vector<8x128xi32>
    %8 = arith.addi %7, %6 : vector<8x128xi32>
    %c32_i32 = arith.constant 32 : i32
    %9 = vector.broadcast %c32_i32 : i32 to vector<8x128xi32>
    %10 = arith.cmpi slt, %8, %9 : vector<8x128xi32>
    %cst = arith.constant 0xFF800000 : f32
    %11 = vector.broadcast %cst : f32 to vector<8x128xf32>
    %12 = arith.select %10, %3, %11 : vector<8x128xi1>, vector<8x128xf32>
    %c0_4 = arith.constant 0 : index
    %c0_5 = arith.constant 0 : index
    %13 = vector.load %arg5[%c0_4, %c0_5] : memref<8x1xf32, #tpu.memory_space<vmem>>, vector<8x1xf32>
    %cst_6 = arith.constant dense<0xFF800000> : vector<8xf32>
    %14 = vector.multi_reduction <maximumf>, %12, %cst_6 [1] : vector<8x128xf32> to vector<8xf32>
    %15 = vector.shape_cast %14 : vector<8xf32> to vector<8x1xf32>
    %16 = arith.maximumf %13, %15 : vector<8x1xf32>
    %c0_7 = arith.constant 0 : index
    %c0_8 = arith.constant 0 : index
    %17 = vector.load %arg6[%c0_7, %c0_8] : memref<8x1xf32, #tpu.memory_space<vmem>>, vector<8x1xf32>
    %18 = arith.subf %13, %16 : vector<8x1xf32>
    %19 = math.exp %18 : vector<8x1xf32>
    %20 = arith.mulf %17, %19 : vector<8x1xf32>
    %21 = vector.broadcast %16 : vector<8x1xf32> to vector<8x128xf32>
    %22 = arith.subf %12, %21 : vector<8x128xf32>
    %23 = math.exp %22 : vector<8x128xf32>
    %cst_9 = arith.constant dense<0.000000e+00> : vector<8xf32>
    %24 = vector.multi_reduction <add>, %23, %cst_9 [1] : vector<8x128xf32> to vector<8xf32>
    %25 = vector.shape_cast %24 : vector<8xf32> to vector<8x1xf32>
    %26 = arith.addf %20, %25 : vector<8x1xf32>
    %c0_10 = arith.constant 0 : index
    %c0_11 = arith.constant 0 : index
    %27 = vector.load %arg6[%c0_10, %c0_11] : memref<8x1xf32, #tpu.memory_space<vmem>>, vector<8x1xf32>
    tpu.vector_store %arg6[%c0_10, %c0_11], %26 {strides = array<i32>} : memref<8x1xf32, #tpu.memory_space<vmem>>, vector<8x1xf32>,
    %c0_12 = arith.constant 0 : index
    %c0_13 = arith.constant 0 : index
    %28 = vector.load %arg5[%c0_12, %c0_13] : memref<8x1xf32, #tpu.memory_space<vmem>>, vector<8x1xf32>
    tpu.vector_store %arg5[%c0_12, %c0_13], %16 {strides = array<i32>} : memref<8x1xf32, #tpu.memory_space<vmem>>, vector<8x1xf32>,
    %c0_14 = arith.constant 0 : index
    %c0_15 = arith.constant 0 : index
    %29 = vector.load %arg7[%c0_14, %c0_15] : memref<8x1xf32, #tpu.memory_space<vmem>>, vector<8x1xf32>
    %30 = vector.broadcast %4 : vector<8x1xi32> to vector<8x128xi32>
    %31 = arith.cmpi eq, %8, %30 : vector<8x128xi32>
    %cst_16 = arith.constant 0.000000e+00 : f32
    %32 = vector.broadcast %cst_16 : f32 to vector<8x128xf32>
    %33 = arith.select %31, %3, %32 : vector<8x128xi1>, vector<8x128xf32>
    %cst_17 = arith.constant dense<0.000000e+00> : vector<8xf32>
    %34 = vector.multi_reduction <add>, %33, %cst_17 [1] : vector<8x128xf32> to vector<8xf32>
    %35 = vector.shape_cast %34 : vector<8xf32> to vector<8x1xf32>
    %36 = arith.addf %29, %35 : vector<8x1xf32>
    %c0_18 = arith.constant 0 : index
    %c0_19 = arith.constant 0 : index
    %37 = vector.load %arg7[%c0_18, %c0_19] : memref<8x1xf32, #tpu.memory_space<vmem>>, vector<8x1xf32>
    tpu.vector_store %arg7[%c0_18, %c0_19], %36 {strides = array<i32>} : memref<8x1xf32, #tpu.memory_space<vmem>>, vector<8x1xf32>,
    %c0_i32_20 = arith.constant 0 : i32
    %38 = arith.cmpi eq, %arg1, %c0_i32_20 : i32
    %39 = arith.extui %38 : i1 to i32
    %c0_i32_21 = arith.constant 0 : i32
    %40 = arith.cmpi ne, %39, %c0_i32_21 : i32
    scf.if %40 {
      %c0_22 = arith.constant 0 : index
      %c0_23 = arith.constant 0 : index
      %41 = vector.load %arg5[%c0_22, %c0_23] : memref<8x1xf32, #tpu.memory_space<vmem>>, vector<8x1xf32>
      %c0_24 = arith.constant 0 : index
      %c0_25 = arith.constant 0 : index
      %42 = vector.load %arg6[%c0_24, %c0_25] : memref<8x1xf32, #tpu.memory_space<vmem>>, vector<8x1xf32>
      %43 = math.log %42 : vector<8x1xf32>
      %44 = arith.addf %41, %43 : vector<8x1xf32>
      %c0_26 = arith.constant 0 : index
      %c0_27 = arith.constant 0 : index
      %45 = vector.load %arg7[%c0_26, %c0_27] : memref<8x1xf32, #tpu.memory_space<vmem>>, vector<8x1xf32>
      %46 = arith.subf %44, %45 : vector<8x1xf32>
      %c0_28 = arith.constant 0 : index
      %c0_29 = arith.constant 0 : index
      %47 = vector.load %arg4[%c0_28, %c0_29] : memref<8x1xf32, #tpu.memory_space<vmem>>, vector<8x1xf32>
      tpu.vector_store %arg4[%c0_28, %c0_29], %46 {strides = array<i32>} : memref<8x1xf32, #tpu.memory_space<vmem>>, vector<8x1xf32>,
    } else {
    }
    return
  }
  func.func @transform_0(%arg0: i32, %arg1: i32) -> (i32, i32) {
    %c0_i32 = arith.constant 0 : i32
    return %arg0, %arg1 : i32, i32
  }
  func.func @transform_1(%arg0: i32, %arg1: i32) -> (i32, i32) {
    %c0_i32 = arith.constant 0 : i32
    %c0_i32_0 = arith.constant 0 : i32
    return %arg0, %c0_i32 : i32, i32
  }
  func.func @transform_2(%arg0: i32, %arg1: i32) -> (i32, i32) {
    %c0_i32 = arith.constant 0 : i32
    %c0_i32_0 = arith.constant 0 : i32
    return %arg0, %c0_i32 : i32, i32
  }
}

</mosaic_0001>

<llo_original>
// kernel: cross_entropy_loss.1
$region0: #{cross_entropy_loss.1}
  #allocation0 [shape = 'u32[]', space=smem, size = 0x4, offset = 0x4, fixed_abs, tag = 'smem constant byte address 0x4 - core index']
  #allocation1 [shape = 'u32[144,128]{1,0:T(1,128)}', space=vmem, size = 0x12000, scoped, tag = 'internal scratch']
  #allocation2 [shape = 'f32[8,1]{1,0:T(8,128)}', space=vmem, size = 0x1000, scoped, tag = 'scratch operand']
  #allocation3 [shape = 'f32[8,1]{1,0:T(8,128)}', space=vmem, size = 0x1000, scoped, tag = 'scratch operand']
  #allocation4 [shape = 'f32[8,1]{1,0:T(8,128)}', space=vmem, size = 0x1000, scoped, tag = 'scratch operand']
  %s0 = inlined_call_operand.vmem [shape: f32[8,128], index: 0, kind: input, shape index: {}]
  %s1 = inlined_call_operand.vmem [shape: s32[8,1], index: 1, kind: input, shape index: {}]
  %s2 = inlined_call_operand.vmem [shape: f32[8,1], index: 2, kind: output, shape index: {}]
  %s3 = sld [smem:[#allocation0]]
  $region26: #{cross_entropy_loss.1} parent=0
    _
  %s5 = ssub.s32 1, %s3
  %s6 = scalar_select 0, %s5, %s3
  // Predicated region
  $region2: #{cross_entropy_loss.1} parent=0 // pred_check
    _
  $region3: #{cross_entropy_loss.1} parent=0 // pred_check_branch
    %8 = sbr.rel (0) target = $region5
  $region4: #{cross_entropy_loss.1} parent=0 // pred_region
    _
  $region5: #{cross_entropy_loss.1} parent=0 // pred_fallthru
    _
  // Predicated region
  $region6: #{cross_entropy_loss.1} parent=0 // pred_check
    _
  $region7: #{cross_entropy_loss.1} parent=0 // pred_check_branch
    %10 = sbr.rel (0) target = $region9
  $region8: #{cross_entropy_loss.1} parent=0 // pred_region
    _
  $region9: #{cross_entropy_loss.1} parent=0 // pred_fallthru
    _
  %p11 = scmp.eq.s32.totalorder 0, 0
  // Predicated region
  $region10: #{cross_entropy_loss.1} parent=0 // pred_check
    %p12 = pneg %p11
  $region11: #{cross_entropy_loss.1} parent=0 // pred_check_branch
    %14 = sbr.rel (%p12) target = $region13
  $region12: #{cross_entropy_loss.1} parent=0 // pred_region
    %vm15 = vcmask 7168
    %16 = vst.msk [vmem:[#allocation2] sm:$0xff] %vm15, -inf
    %17 = vst.msk [vmem:[#allocation3] sm:$0xff] %vm15, 0.0
    %18 = vst.msk [vmem:[#allocation4] sm:$0xff] %vm15, 0.0
  $region13: #{cross_entropy_loss.1} parent=0 // pred_fallthru
    _
  %v19 = vld [vmem:[%s0] sm:$0xff]
  %v20 = vld [vmem:[%s1] sm:$0xff]
  %s21 = smul.u32 0, 128
  %v22 = vlaneseq
  %v23 = vand.u32 %v22, 127
  %v24 = vstv %s21
  %v25 = vadd.s32 %v24, %v23
  %vm26 = vcmp.lt.s32.totalorder %v25, 32
  %v27 = vsel %vm26, %v19, -inf
  %v28 = vld [vmem:[#allocation2] sm:$0xff]
  %29 = vmax.xlane.f32.xlu0 %v27
  %v30 = vpop.xlane.xlu0 %29
  %v31 = vmax.f32 %v28, %v30
  %v32 = vld [vmem:[#allocation3] sm:$0xff]
  %v33 = vsub.f32 %v28, %v31
  %v34 = vmul.f32 %v33, 1.442695
  %v35 = vpow.pop %v34
  %v36 = vmul.f32 %v32, %v35
  %38 = vset.pattern.permute.xlu0 0
  %39 = vperm.xlu0 %38, %v31
  %v40 = vpop.permute.xlu0 %39
  %v42 = vsub.f32 %v27, %v40
  %v43 = vmul.f32 %v42, 1.442695
  %v44 = vpow.pop %v43
  %45 = vadd.xlane.f32.xlu0 %v44
  %v46 = vpop.xlane.xlu0 %45
  %v47 = vadd.f32 %v36, %v46
  %vm48 = vcmask 7168
  %49 = vst.msk [vmem:[#allocation3] sm:$0xff] %vm48, %v47
  %50 = vst.msk [vmem:[#allocation2] sm:$0xff] %vm48, %v31
  %v51 = vld [vmem:[#allocation4] sm:$0xff]
  %52 = vset.pattern.permute.xlu0 0
  %53 = vperm.xlu0 %52, %v20
  %v54 = vpop.permute.xlu0 %53
  %vm55 = vcmp.eq.s32.totalorder %v25, %v54
  %v56 = vsel %vm55, %v19, 0.0
  %57 = vadd.xlane.f32.xlu0 %v56
  %v58 = vpop.xlane.xlu0 %57
  %v59 = vadd.f32 %v51, %v58
  %60 = vst.msk [vmem:[#allocation4] sm:$0xff] %vm48, %v59
  // Predicated region
  $region14: #{cross_entropy_loss.1} parent=0 // pred_check
    %p61 = pneg %p11
  $region15: #{cross_entropy_loss.1} parent=0 // pred_check_branch
    %63 = sbr.rel (%p61) target = $region17
  $region16: #{cross_entropy_loss.1} parent=0 // pred_region
    %v64 = vld [vmem:[#allocation2] sm:$0xff]
    %v65 = vld [vmem:[#allocation3] sm:$0xff]
    %v66 = vlog2.pop %v65
    %v67 = vmul.f32 %v66, 0.6931472
    %v68 = vadd.f32 %v64, %v67
    %v69 = vld [vmem:[#allocation4] sm:$0xff]
    %v70 = vsub.f32 %v68, %v69
    %71 = vst.msk [vmem:[%s2] sm:$0xff] %vm48, %v70
  $region17: #{cross_entropy_loss.1} parent=0 // pred_fallthru
    _
  // Predicated region
  $region18: #{cross_entropy_loss.1} parent=0 // pred_check
    _
  $region19: #{cross_entropy_loss.1} parent=0 // pred_check_branch
    %73 = sbr.rel (0) target = $region21
  $region20: #{cross_entropy_loss.1} parent=0 // pred_region
    _
  $region21: #{cross_entropy_loss.1} parent=0 // pred_fallthru
    _
  // Predicated region
  $region22: #{cross_entropy_loss.1} parent=0 // pred_check
    _
  $region23: #{cross_entropy_loss.1} parent=0 // pred_check_branch
    %75 = sbr.rel (0) target = $region25
  $region24: #{cross_entropy_loss.1} parent=0 // pred_region
    _
  $region25: #{cross_entropy_loss.1} parent=0 // pred_fallthru
    _

</llo_original>
